<compile_context>
chip_gen: v7x
topology: tpu7x:2x2x1
jax: 0.10.0
libtpu: 0.0.40
codegen_flags: <defaults>
</compile_context>

<pallas_src>
import functools

import jax
import jax.numpy as jnp
from jax.experimental import pallas as pl
from jax.experimental.pallas import tpu as pltpu

NEG_SLOPE = 0.01  # nn.LeakyReLU() default negative_slope


def _round_up(n, m):
    return ((n + m - 1) // m) * m


def _fused_mlp_kernel(*refs, n_hidden):
    """Fused MLP: x -> (Linear + LeakyReLU) * n_hidden -> Linear.

    refs = (x_ref, w0, b0, ..., w_{n_hidden-1}, b_{n_hidden-1}, wV, bV, o_ref)
    Weights are pre-transposed (in, out) in the low-precision compute dtype
    (bf16); biases are f32 (1, out). Matmuls accumulate in f32 on the MXU via
    preferred_element_type; the intermediate activation stays on-chip.
    """
    x_ref = refs[0]
    o_ref = refs[-1]
    p = refs[1:-1]

    compute_dtype = x_ref.dtype
    h = x_ref[...]                                       # bf16 operand
    for layer in range(n_hidden):
        w = p[2 * layer][...]                            # bf16
        b = p[2 * layer + 1][...]                        # f32
        acc = jnp.dot(h, w, preferred_element_type=jnp.float32) + b
        acc = jnp.maximum(acc, NEG_SLOPE * acc)          # LeakyReLU (mul+max, VPU)
        h = acc.astype(compute_dtype)
    wv = p[-2][...]
    bv = p[-1][...]
    y = jnp.dot(h, wv, preferred_element_type=jnp.float32) + bv
    o_ref[...] = y.astype(o_ref.dtype)


def init_mlp_params(key, hidden_dim, output_dim, L=2):
    """PyTorch nn.Linear-style init; weights stored pre-transposed (in, out), f32."""
    params = {"U": [], "V": None}
    bound = 1.0 / float(hidden_dim) ** 0.5
    for _ in range(L - 1):
        key, kw, kb = jax.random.split(key, 3)
        w_t = jax.random.uniform(kw, (hidden_dim, hidden_dim), jnp.float32,
                                 -bound, bound)
        b = jax.random.uniform(kb, (1, hidden_dim), jnp.float32, -bound, bound)
        params["U"].append((w_t, b))
    key, kw, kb = jax.random.split(key, 3)
    w_t = jax.random.uniform(kw, (hidden_dim, output_dim), jnp.float32,
                             -bound, bound)
    b = jax.random.uniform(kb, (1, output_dim), jnp.float32, -bound, bound)
    params["V"] = (w_t, b)
    return params


def prepare_mlp_params(params, compute_dtype=jnp.bfloat16):
    """Pad feature dims to lane multiples (128) and cast weights ONCE.

    Done outside the per-call path so repeated forward calls do not re-pad /
    re-cast every weight through HBM on each invocation.
    """
    u_params = params["U"]
    wv, bv = params["V"]
    hidden_dim, output_dim = wv.shape
    hid_p = _round_up(hidden_dim, 128)
    out_p = _round_up(output_dim, 128)
    # TODO(synk): on v6e/v7x the MXU is 256-wide; if the model config allows,
    # prefer hidden/output dims that are multiples of 256 (padding small dims
    # up to 256 here would just add wasted work, so we keep 128-multiples).

    flat = []
    for (w, b) in u_params:
        flat.append(jnp.pad(w, ((0, hid_p - hidden_dim),
                                (0, hid_p - hidden_dim))).astype(compute_dtype))
        flat.append(jnp.pad(b, ((0, 0),
                                (0, hid_p - hidden_dim))).astype(jnp.float32))
    flat.append(jnp.pad(wv, ((0, hid_p - hidden_dim),
                             (0, out_p - output_dim))).astype(compute_dtype))
    flat.append(jnp.pad(bv, ((0, 0),
                             (0, out_p - output_dim))).astype(jnp.float32))
    return {
        "flat": flat,
        "n_hidden": len(u_params),
        "hidden_dim": hidden_dim,
        "output_dim": output_dim,
        "hid_p": hid_p,
        "out_p": out_p,
        "compute_dtype": compute_dtype,
    }


def mlp_forward(prepared, x, *, max_tile_b=2048):
    """Pallas fused MLP forward. x: (batch, hidden_dim) -> (batch, output_dim)."""
    flat = prepared["flat"]
    n_hidden = prepared["n_hidden"]
    hidden_dim = prepared["hidden_dim"]
    output_dim = prepared["output_dim"]
    hid_p = prepared["hid_p"]
    out_p = prepared["out_p"]
    compute_dtype = prepared["compute_dtype"]

    batch = x.shape[0]
    out_dtype = x.dtype
    compute_bytes = jnp.dtype(compute_dtype).itemsize
    out_bytes = jnp.dtype(out_dtype).itemsize

    # ---- batch-tile selection --------------------------------------------
    # Keep double-buffered x/y slabs + f32 intermediate within an activation
    # budget that leaves room for the resident weights on every generation
    # (v7x: 64 MiB/TC), but make tiles as large as possible when feature dims
    # are small (amortizes ~0.35us/step overhead, lane-dense output stores).
    act_budget = 24 * 1024 * 1024
    per_row = 2 * hid_p * compute_bytes + 2 * out_p * out_bytes + hid_p * 4
    cap = max(8, min(_round_up(max_tile_b, 8), (act_budget // per_row) // 8 * 8))
    # Aim for >= 4 batch tiles so the "parallel" axis shards across both
    # TensorCores on v7x and the DMA pipeline has work to overlap.
    target = _round_up(max(pl.cdiv(batch, 4), 8), 8)
    tile_b = max(8, min(cap, target, _round_up(batch, 8)))
    batch_p = _round_up(batch, tile_b)
    grid = (batch_p // tile_b,)

    # Pad (and cast) activations; zero-padded rows/cols don't change valid
    # outputs, and padded batch rows are sliced off below.
    xp = jnp.pad(x, ((0, batch_p - batch),
                     (0, hid_p - hidden_dim))).astype(compute_dtype)

    in_specs = [pl.BlockSpec((tile_b, hid_p), lambda i: (i, 0))]
    for _ in flat:
        # Whole-array, single-buffered, VMEM-resident parameters: no per-step
        # re-DMA, no double-buffer copy -> half the weight VMEM footprint.
        in_specs.append(pl.BlockSpec(memory_space=pltpu.MemorySpace.VMEM))
    out_specs = pl.BlockSpec((tile_b, out_p), lambda i: (i, 0))
    # TODO(synk): for hidden_dim large enough that a layer's weight cannot stay
    # VMEM-resident (>~4-6K on v7x), add a K/N-tiled path (grid axis over
    # weight tiles with a VMEM accumulator, weights left in HBM via pl.ANY).

    weight_bytes = sum(int(prm.size) * prm.dtype.itemsize for prm in flat)
    vmem_bytes = (2 * tile_b * hid_p * compute_bytes      # x double buffer
                  + 2 * tile_b * out_p * out_bytes        # y double buffer
                  + tile_b * hid_p * 4                    # f32 intermediate h
                  + weight_bytes)                         # single-buffered params
    vmem_limit = min(64 * 1024 * 1024,
                     max(32 * 1024 * 1024, int(1.25 * vmem_bytes) + (2 << 20)))

    flops = 2 * batch_p * hid_p * (hid_p * n_hidden + out_p)
    bytes_accessed = (batch_p * hid_p * compute_bytes
                      + batch_p * out_p * out_bytes
                      + weight_bytes)

    kernel = functools.partial(_fused_mlp_kernel, n_hidden=n_hidden)
    yp = pl.pallas_call(
        kernel,
        out_shape=jax.ShapeDtypeStruct((batch_p, out_p), out_dtype),
        grid_spec=pltpu.PrefetchScalarGridSpec(
            num_scalar_prefetch=0,
            grid=grid,
            in_specs=in_specs,
            out_specs=out_specs,
        ),
        compiler_params=pltpu.CompilerParams(
            dimension_semantics=("parallel",),
            vmem_limit_bytes=vmem_limit,
        ),
        cost_estimate=pl.CostEstimate(flops=flops, transcendentals=0,
                                      bytes_accessed=bytes_accessed),
    )(xp, *flat)

    return yp[:batch, :output_dim]


def mlp_reference_f32(params, x):
    """Plain-JAX f32 reference (module semantics)."""
    h = x
    for (w_t, b) in params["U"]:
        h = h @ w_t + b
        h = jnp.where(h > 0, h, NEG_SLOPE * h)
    w_t, b = params["V"]
    return h @ w_t + b


def mlp_reference_mixed(params, x, compute_dtype=jnp.bfloat16):
    """Plain-JAX reference matching the kernel dtype strategy (bf16 ops, f32 acc)."""
    h = x.astype(compute_dtype)
    for (w_t, b) in params["U"]:
        a = jnp.dot(h, w_t.astype(compute_dtype),
                    preferred_element_type=jnp.float32) + b
        a = jnp.maximum(a, NEG_SLOPE * a)
        h = a.astype(compute_dtype)
    w_t, b = params["V"]
    return jnp.dot(h, w_t.astype(compute_dtype),
                   preferred_element_type=jnp.float32) + b


if __name__ == "__main__":
    batch, hidden_dim, output_dim, L = 8, 32, 16, 2

    key = jax.random.PRNGKey(0)
    key, kx = jax.random.split(key)
    x = jax.random.normal(kx, (batch, hidden_dim), jnp.float32)

    params = init_mlp_params(key, hidden_dim, output_dim, L=L)
    prepared = prepare_mlp_params(params, compute_dtype=jnp.bfloat16)

    y = mlp_forward(prepared, x)
    y = jax.block_until_ready(y)
    assert y.shape == (batch, output_dim)

    # Tight check against a reference that uses the same bf16-operand /
    # f32-accumulate strategy; loose check against the pure-f32 module math
    # (difference is only bf16 rounding of the matmul operands).
    y_mixed = mlp_reference_mixed(params, x)
    y_f32 = mlp_reference_f32(params, x)
    assert jnp.allclose(y, y_mixed, atol=2e-3, rtol=2e-3), float(
        jnp.max(jnp.abs(y - y_mixed)))
    assert jnp.allclose(y, y_f32, atol=1e-1, rtol=1e-1), float(
        jnp.max(jnp.abs(y - y_f32)))

    print("KERNEL_OK")
</pallas_src>

<mosaic_0001>
module attributes {stable_mosaic.version = 11 : i64} {
  func.func @_fused_mlp_kernel(%arg0: i32, %arg1: memref<8x128xbf16, #tpu.memory_space<vmem>>, %arg2: memref<128x128xbf16, #tpu.memory_space<vmem>>, %arg3: memref<1x128xf32, #tpu.memory_space<vmem>>, %arg4: memref<128x128xbf16, #tpu.memory_space<vmem>>, %arg5: memref<1x128xf32, #tpu.memory_space<vmem>>, %arg6: memref<8x128xf32, #tpu.memory_space<vmem>>) attributes {dimension_semantics = [#tpu.dimension_semantics<parallel>], iteration_bounds = array<i64: 1>, scalar_prefetch = 0 : i64, scratch_operands = 0 : i64, tpu.core_type = #tpu.core_type<tc>, window_params = [{transform_indices = @transform_0, window_bounds = array<i64: 8, 128>}, {pipeline_mode = #tpu.pipeline_mode<synchronous>, transform_indices = @transform_1, window_bounds = array<i64: 128, 128>}, {pipeline_mode = #tpu.pipeline_mode<synchronous>, transform_indices = @transform_2, window_bounds = array<i64: 1, 128>}, {pipeline_mode = #tpu.pipeline_mode<synchronous>, transform_indices = @transform_3, window_bounds = array<i64: 128, 128>}, {pipeline_mode = #tpu.pipeline_mode<synchronous>, transform_indices = @transform_4, window_bounds = array<i64: 1, 128>}, {transform_indices = @transform_5, window_bounds = array<i64: 8, 128>}]} {
    %c0 = arith.constant 0 : index
    %c0_0 = arith.constant 0 : index
    %0 = vector.load %arg1[%c0, %c0_0] : memref<8x128xbf16, #tpu.memory_space<vmem>>, vector<8x128xbf16>
    %c0_1 = arith.constant 0 : index
    %c0_2 = arith.constant 0 : index
    %1 = vector.load %arg2[%c0_1, %c0_2] : memref<128x128xbf16, #tpu.memory_space<vmem>>, vector<128x128xbf16>
    %c0_3 = arith.constant 0 : index
    %c0_4 = arith.constant 0 : index
    %2 = vector.load %arg3[%c0_3, %c0_4] : memref<1x128xf32, #tpu.memory_space<vmem>>, vector<1x128xf32>
    %cst = arith.constant dense<0.000000e+00> : vector<8x128xf32>
    %3 = tpu.matmul %0, %1, %cst {dimension_numbers = #tpu.dot_dimension_numbers<[1], [0], [0], [1], [0, 0, 1, 1], [], []>} : vector<8x128xbf16>, vector<128x128xbf16>, vector<8x128xf32> -> vector<8x128xf32>
    %4 = vector.broadcast %2 : vector<1x128xf32> to vector<8x128xf32>
    %5 = arith.addf %3, %4 : vector<8x128xf32>
    %cst_5 = arith.constant 0.00999999977 : f32
    %6 = vector.broadcast %cst_5 : f32 to vector<8x128xf32>
    %7 = arith.mulf %6, %5 : vector<8x128xf32>
    %8 = arith.maximumf %5, %7 : vector<8x128xf32>
    %9 = arith.truncf %8 : vector<8x128xf32> to vector<8x128xbf16>
    %c0_6 = arith.constant 0 : index
    %c0_7 = arith.constant 0 : index
    %10 = vector.load %arg4[%c0_6, %c0_7] : memref<128x128xbf16, #tpu.memory_space<vmem>>, vector<128x128xbf16>
    %c0_8 = arith.constant 0 : index
    %c0_9 = arith.constant 0 : index
    %11 = vector.load %arg5[%c0_8, %c0_9] : memref<1x128xf32, #tpu.memory_space<vmem>>, vector<1x128xf32>
    %cst_10 = arith.constant dense<0.000000e+00> : vector<8x128xf32>
    %12 = tpu.matmul %9, %10, %cst_10 {dimension_numbers = #tpu.dot_dimension_numbers<[1], [0], [0], [1], [0, 0, 1, 1], [], []>} : vector<8x128xbf16>, vector<128x128xbf16>, vector<8x128xf32> -> vector<8x128xf32>
    %13 = vector.broadcast %11 : vector<1x128xf32> to vector<8x128xf32>
    %14 = arith.addf %12, %13 : vector<8x128xf32>
    %c0_11 = arith.constant 0 : index
    %c0_12 = arith.constant 0 : index
    %15 = vector.load %arg6[%c0_11, %c0_12] : memref<8x128xf32, #tpu.memory_space<vmem>>, vector<8x128xf32>
    tpu.vector_store %arg6[%c0_11, %c0_12], %14 {strides = array<i32>} : memref<8x128xf32, #tpu.memory_space<vmem>>, vector<8x128xf32>,
    return
  }
  func.func @transform_0(%arg0: i32) -> (i32, i32) {
    %c0_i32 = arith.constant 0 : i32
    %c0_i32_0 = arith.constant 0 : i32
    return %arg0, %c0_i32 : i32, i32
  }
  func.func @transform_1(%arg0: i32) -> (i32, i32) {
    %c0_i32 = arith.constant 0 : i32
    %c0_i32_0 = arith.constant 0 : i32
    %c0_i32_1 = arith.constant 0 : i32
    return %c0_i32, %c0_i32_0 : i32, i32
  }
  func.func @transform_2(%arg0: i32) -> (i32, i32) {
    %c0_i32 = arith.constant 0 : i32
    %c0_i32_0 = arith.constant 0 : i32
    %c0_i32_1 = arith.constant 0 : i32
    return %c0_i32, %c0_i32_0 : i32, i32
  }
  func.func @transform_3(%arg0: i32) -> (i32, i32) {
    %c0_i32 = arith.constant 0 : i32
    %c0_i32_0 = arith.constant 0 : i32
    %c0_i32_1 = arith.constant 0 : i32
    return %c0_i32, %c0_i32_0 : i32, i32
  }
  func.func @transform_4(%arg0: i32) -> (i32, i32) {
    %c0_i32 = arith.constant 0 : i32
    %c0_i32_0 = arith.constant 0 : i32
    %c0_i32_1 = arith.constant 0 : i32
    return %c0_i32, %c0_i32_0 : i32, i32
  }
  func.func @transform_5(%arg0: i32) -> (i32, i32) {
    %c0_i32 = arith.constant 0 : i32
    %c0_i32_0 = arith.constant 0 : i32
    return %arg0, %c0_i32 : i32, i32
  }
}

</mosaic_0001>

<llo_original>
// kernel: tpu_custom_call.1
$region0: #{tpu_custom_call.1}
  #allocation0 [shape = 'u32[]', space=smem, size = 0x4, offset = 0x4, fixed_abs, tag = 'smem constant byte address 0x4 - core index']
  #allocation1 [shape = 'u32[144,128]{1,0:T(1,128)}', space=vmem, size = 0x12000, scoped, tag = 'internal scratch']
  %s0 = inlined_call_operand.hbm [shape: bf16[8,128], index: 0, kind: input, shape index: {}]
  %s1 = inlined_call_operand.hbm [shape: bf16[128,128], index: 1, kind: input, shape index: {}]
  %s2 = inlined_call_operand.vmem [shape: f32[1,128], index: 2, kind: input, shape index: {}]
  %s3 = inlined_call_operand.hbm [shape: bf16[128,128], index: 3, kind: input, shape index: {}]
  %s4 = inlined_call_operand.vmem [shape: f32[1,128], index: 4, kind: input, shape index: {}]
  %s5 = inlined_call_operand.hbm [shape: f32[8,128], index: 5, kind: output, shape index: {}]
  %s6 = sld [smem:[#allocation0]]
  $region42: #{tpu_custom_call.1} parent=0
    _
  %s8 = ssub.s32 1, %s6
  %s9 = scalar_select 0, %s8, %s6
  $region1: #{tpu_custom_call.1} parent=0
    #allocation2 [shape = 'u8[2048]{0}', space=vmem, size = 0x800, scoped, tag = 'input window, operand 0, single buffered']
    #allocation3 [shape = 's32[1]{0}', space=sflag, size = 0x4, scoped, tag = 'scoped memory for tpu_custom_call.1']
    #allocation4 [shape = 's32[1]{0}', space=sflag, size = 0x4, scoped, tag = 'scoped memory for tpu_custom_call.1']
    #allocation5 [shape = 'u8[32768]{0}', space=vmem, size = 0x8000, scoped, tag = 'input window, operand 1, single buffered']
    #allocation6 [shape = 's32[1]{0}', space=sflag, size = 0x4, scoped, tag = 'scoped memory for tpu_custom_call.1']
    #allocation7 [shape = 'u8[32768]{0}', space=vmem, size = 0x8000, scoped, tag = 'input window, operand 3, single buffered']
    #allocation8 [shape = 'u8[4096]{0}', space=vmem, size = 0x1000, scoped, tag = 'output window, operand 0, single buffered']
    %10 = vsyncpa [#allocation3], 0
    %11 = vsyncpa [#allocation6], 0
    %12 = vsyncpa [#allocation4], 0
    // Predicated region
    $region2: #{tpu_custom_call.1} parent=1 // pred_check
      _
    $region3: #{tpu_custom_call.1} parent=1 // pred_check_branch
      %14 = sbr.rel (0) target = $region5
    $region4: #{tpu_custom_call.1} parent=1 // pred_region
      %s16 = ssub.s32 64, 64
      %17 = vsyncadd [#allocation3], %s16
      %s19 = sshll.u32 [#allocation2], 4
      %s20 = int_to_ptr.vmem [resolvable:$true] %s19
      %22 = dma.hbm_to_vmem [thread:$0]  %s0, 64, %s20, [#allocation3]
    $region5: #{tpu_custom_call.1} parent=1 // pred_fallthru
      _
    // Predicated region
    $region6: #{tpu_custom_call.1} parent=1 // pred_check
      _
    $region7: #{tpu_custom_call.1} parent=1 // pred_check_branch
      %24 = sbr.rel (0) target = $region9
    $region8: #{tpu_custom_call.1} parent=1 // pred_region
      %s26 = ssub.s32 1024, 1024
      %27 = vsyncadd [#allocation6], %s26
      %s28 = sshll.u32 [#allocation5], 4
      %s29 = int_to_ptr.vmem [resolvable:$true] %s28
      %34 = dma.hbm_to_vmem [thread:$0]  %s1, 1024, %s29, [#allocation6], 64, 64, 4
    $region9: #{tpu_custom_call.1} parent=1 // pred_fallthru
      _
    // Predicated region
    $region10: #{tpu_custom_call.1} parent=1 // pred_check
      _
    $region11: #{tpu_custom_call.1} parent=1 // pred_check_branch
      %36 = sbr.rel (0) target = $region13
    $region12: #{tpu_custom_call.1} parent=1 // pred_region
      _
    $region13: #{tpu_custom_call.1} parent=1 // pred_fallthru
      _
    // Predicated region
    $region14: #{tpu_custom_call.1} parent=1 // pred_check
      _
    $region15: #{tpu_custom_call.1} parent=1 // pred_check_branch
      %38 = sbr.rel (0) target = $region17
    $region16: #{tpu_custom_call.1} parent=1 // pred_region
      %s40 = ssub.s32 1024, 1024
      %41 = vsyncadd [#allocation6], %s40
      %s42 = sshll.u32 [#allocation7], 4
      %s43 = int_to_ptr.vmem [resolvable:$true] %s42
      %48 = dma.hbm_to_vmem [thread:$0]  %s3, 1024, %s43, [#allocation6], 64, 64, 4
    $region17: #{tpu_custom_call.1} parent=1 // pred_fallthru
      _
    // Predicated region
    $region18: #{tpu_custom_call.1} parent=1 // pred_check
      _
    $region19: #{tpu_custom_call.1} parent=1 // pred_check_branch
      %50 = sbr.rel (0) target = $region21
    $region20: #{tpu_custom_call.1} parent=1 // pred_region
      _
    $region21: #{tpu_custom_call.1} parent=1 // pred_fallthru
      _
    // Predicated region
    $region22: #{tpu_custom_call.1} parent=1 // pred_check
      _
    $region23: #{tpu_custom_call.1} parent=1 // pred_check_branch
      %52 = sbr.rel (0) target = $region25
    $region24: #{tpu_custom_call.1} parent=1 // pred_region
      %53 = dma.done [#allocation3], 64
    $region25: #{tpu_custom_call.1} parent=1 // pred_fallthru
      _
    // Predicated region
    $region26: #{tpu_custom_call.1} parent=1 // pred_check
      _
    $region27: #{tpu_custom_call.1} parent=1 // pred_check_branch
      %55 = sbr.rel (0) target = $region29
    $region28: #{tpu_custom_call.1} parent=1 // pred_region
      %56 = dma.done [#allocation6], 1024
    $region29: #{tpu_custom_call.1} parent=1 // pred_fallthru
      _
    // Predicated region
    $region30: #{tpu_custom_call.1} parent=1 // pred_check
      _
    $region31: #{tpu_custom_call.1} parent=1 // pred_check_branch
      %58 = sbr.rel (0) target = $region33
    $region32: #{tpu_custom_call.1} parent=1 // pred_region
      %59 = dma.done [#allocation6], 1024
    $region33: #{tpu_custom_call.1} parent=1 // pred_fallthru
      _
    %v61 = vld [vmem:[#allocation2] sm:$0xf]
    %v62 = vld [vmem:[#allocation5] sm:$0xf]
    %v63 = vld [vmem:[#allocation5 + $0x4] sm:$0xf]
    %v64 = vld [vmem:[#allocation5 + $0x8] sm:$0xf]
    %v65 = vld [vmem:[#allocation5 + $0xc] sm:$0xf]
    %v66 = vld [vmem:[#allocation5 + $0x10] sm:$0xf]
    %v67 = vld [vmem:[#allocation5 + $0x14] sm:$0xf]
    %v68 = vld [vmem:[#allocation5 + $0x18] sm:$0xf]
    %v69 = vld [vmem:[#allocation5 + $0x1c] sm:$0xf]
    %v70 = vld [vmem:[#allocation5 + $0x20] sm:$0xf]
    %v71 = vld [vmem:[#allocation5 + $0x24] sm:$0xf]
    %v72 = vld [vmem:[#allocation5 + $0x28] sm:$0xf]
    %v73 = vld [vmem:[#allocation5 + $0x2c] sm:$0xf]
    %v74 = vld [vmem:[#allocation5 + $0x30] sm:$0xf]
    %v75 = vld [vmem:[#allocation5 + $0x34] sm:$0xf]
    %v76 = vld [vmem:[#allocation5 + $0x38] sm:$0xf]
    %v77 = vld [vmem:[#allocation5 + $0x3c] sm:$0xf]
    %v78 = vld [vmem:[%s2] sm:$0x1]
    %v80 = vlaneseq
    %v81 = vshrl.u32 %v80, 7
    %v82 = vsub.s32 0, %v81
    %v83 = vrot.slane %v78, %v82
    %v101 = vunpack.c.l.b16 %v62
    %v102 = vunpack.c.l.b16 %v63
    %v103 = vunpack.c.l.b16 %v64
    %v104 = vunpack.c.l.b16 %v65
    %v105 = vunpack.c.l.b16 %v66
    %v106 = vunpack.c.l.b16 %v67
    %v107 = vunpack.c.l.b16 %v68
    %v108 = vunpack.c.l.b16 %v69
    %v109 = vunpack.c.l.b16 %v70
    %v110 = vunpack.c.l.b16 %v71
    %v111 = vunpack.c.l.b16 %v72
    %v112 = vunpack.c.l.b16 %v73
    %v113 = vunpack.c.l.b16 %v74
    %v114 = vunpack.c.l.b16 %v75
    %v115 = vunpack.c.l.b16 %v76
    %v116 = vunpack.c.l.b16 %v77
    %v117 = vpack.c.b16 %v102, %v101
    %v118 = vpack.c.b16 %v104, %v103
    %v119 = vpack.c.b16 %v106, %v105
    %v120 = vpack.c.b16 %v108, %v107
    %v121 = vpack.c.b16 %v110, %v109
    %v122 = vpack.c.b16 %v112, %v111
    %v123 = vpack.c.b16 %v114, %v113
    %v124 = vpack.c.b16 %v116, %v115
    %133 = vmatprep.subr.bf16.mxu0 0
    %134 = vmatpush1.bf16.msra.mxu0 %v117
    %135 = vmatprep.subr.bf16.mxu0 0
    %136 = vmatpush1.bf16.msra.mxu0 %v118
    %137 = vmatprep.subr.bf16.mxu0 0
    %138 = vmatpush1.bf16.msra.mxu0 %v119
    %139 = vmatprep.subr.bf16.mxu0 0
    %140 = vmatpush1.bf16.msra.mxu0 %v120
    %141 = vmatprep.subr.bf16.mxu0 0
    %142 = vmatpush1.bf16.msra.mxu0 %v121
    %143 = vmatprep.subr.bf16.mxu0 0
    %144 = vmatpush1.bf16.msra.mxu0 %v122
    %145 = vmatprep.subr.bf16.mxu0 0
    %146 = vmatpush1.bf16.msra.mxu0 %v123
    %147 = vmatprep.subr.bf16.mxu0 0
    %148 = vmatpush1.bf16.msra.mxu0 %v124
    %149 = vmatprep.subr.bf16.mxu0 0
    %150 = vmatpush1.bf16.msra.mxu0 0
    %151 = vmatprep.subr.bf16.mxu0 0
    %152 = vmatpush1.bf16.msra.mxu0 0
    %153 = vmatprep.subr.bf16.mxu0 0
    %154 = vmatpush1.bf16.msra.mxu0 0
    %155 = vmatprep.subr.bf16.mxu0 0
    %156 = vmatpush1.bf16.msra.mxu0 0
    %157 = vmatprep.subr.bf16.mxu0 0
    %158 = vmatpush1.bf16.msra.mxu0 0
    %159 = vmatprep.subr.bf16.mxu0 0
    %160 = vmatpush1.bf16.msra.mxu0 0
    %161 = vmatprep.subr.bf16.mxu0 0
    %162 = vmatpush1.bf16.msra.mxu0 0
    %163 = vmatprep.subr.bf16.mxu0 0
    %164 = vmatpush1.bf16.msra.mxu0 0
    %165 = vmatprep.mubr.bf16.mxu0 0
    %166 = vmatmul.mubr.bf16.gmra.mrb[0].mxu0 %v61
    %v167 = vpop.f32.mrb[0].mxu0
    %v168 = vadd.f32 %v83, %v167
    %v169 = vpop.f32.mrb[0].mxu0
    %v170 = vpop.f32.mrb[0].mxu0
    %v171 = vpop.f32.mrb[0].mxu0
    %172 = vdwg.mxu0
    %v173 = vmul.f32 %v168, 0.01
    %v174 = vmax.f32 %v168, %v173
    %v175 = vpack.c.bf16 %v174, %v174
    %v176 = vld [vmem:[#allocation7] sm:$0xf]
    %v177 = vld [vmem:[#allocation7 + $0x4] sm:$0xf]
    %v178 = vld [vmem:[#allocation7 + $0x8] sm:$0xf]
    %v179 = vld [vmem:[#allocation7 + $0xc] sm:$0xf]
    %v180 = vld [vmem:[#allocation7 + $0x10] sm:$0xf]
    %v181 = vld [vmem:[#allocation7 + $0x14] sm:$0xf]
    %v182 = vld [vmem:[#allocation7 + $0x18] sm:$0xf]
    %v183 = vld [vmem:[#allocation7 + $0x1c] sm:$0xf]
    %v184 = vld [vmem:[#allocation7 + $0x20] sm:$0xf]
    %v185 = vld [vmem:[#allocation7 + $0x24] sm:$0xf]
    %v186 = vld [vmem:[#allocation7 + $0x28] sm:$0xf]
    %v187 = vld [vmem:[#allocation7 + $0x2c] sm:$0xf]
    %v188 = vld [vmem:[#allocation7 + $0x30] sm:$0xf]
    %v189 = vld [vmem:[#allocation7 + $0x34] sm:$0xf]
    %v190 = vld [vmem:[#allocation7 + $0x38] sm:$0xf]
    %v191 = vld [vmem:[#allocation7 + $0x3c] sm:$0xf]
    %v192 = vld [vmem:[%s4] sm:$0x1]
    %v194 = vlaneseq
    %v195 = vshrl.u32 %v194, 7
    %v196 = vsub.s32 0, %v195
    %v197 = vrot.slane %v192, %v196
    %v215 = vunpack.c.l.b16 %v176
    %v216 = vunpack.c.l.b16 %v177
    %v217 = vunpack.c.l.b16 %v178
    %v218 = vunpack.c.l.b16 %v179
    %v219 = vunpack.c.l.b16 %v180
    %v220 = vunpack.c.l.b16 %v181
    %v221 = vunpack.c.l.b16 %v182
    %v222 = vunpack.c.l.b16 %v183
    %v223 = vunpack.c.l.b16 %v184
    %v224 = vunpack.c.l.b16 %v185
    %v225 = vunpack.c.l.b16 %v186
    %v226 = vunpack.c.l.b16 %v187
    %v227 = vunpack.c.l.b16 %v188
    %v228 = vunpack.c.l.b16 %v189
    %v229 = vunpack.c.l.b16 %v190
    %v230 = vunpack.c.l.b16 %v191
    %v231 = vpack.c.b16 %v216, %v215
    %v232 = vpack.c.b16 %v218, %v217
    %v233 = vpack.c.b16 %v220, %v219
    %v234 = vpack.c.b16 %v222, %v221
    %v235 = vpack.c.b16 %v224, %v223
    %v236 = vpack.c.b16 %v226, %v225
    %v237 = vpack.c.b16 %v228, %v227
    %v238 = vpack.c.b16 %v230, %v229
    %247 = vmatprep.subr.bf16.mxu0 0
    %248 = vmatpush1.bf16.msra.mxu0 %v231
    %249 = vmatprep.subr.bf16.mxu0 0
    %250 = vmatpush1.bf16.msra.mxu0 %v232
    %251 = vmatprep.subr.bf16.mxu0 0
    %252 = vmatpush1.bf16.msra.mxu0 %v233
    %253 = vmatprep.subr.bf16.mxu0 0
    %254 = vmatpush1.bf16.msra.mxu0 %v234
    %255 = vmatprep.subr.bf16.mxu0 0
    %256 = vmatpush1.bf16.msra.mxu0 %v235
    %257 = vmatprep.subr.bf16.mxu0 0
    %258 = vmatpush1.bf16.msra.mxu0 %v236
    %259 = vmatprep.subr.bf16.mxu0 0
    %260 = vmatpush1.bf16.msra.mxu0 %v237
    %261 = vmatprep.subr.bf16.mxu0 0
    %262 = vmatpush1.bf16.msra.mxu0 %v238
    %263 = vmatprep.subr.bf16.mxu0 0
    %264 = vmatpush1.bf16.msra.mxu0 0
    %265 = vmatprep.subr.bf16.mxu0 0
    %266 = vmatpush1.bf16.msra.mxu0 0
    %267 = vmatprep.subr.bf16.mxu0 0
    %268 = vmatpush1.bf16.msra.mxu0 0
    %269 = vmatprep.subr.bf16.mxu0 0
    %270 = vmatpush1.bf16.msra.mxu0 0
    %271 = vmatprep.subr.bf16.mxu0 0
    %272 = vmatpush1.bf16.msra.mxu0 0
    %273 = vmatprep.subr.bf16.mxu0 0
    %274 = vmatpush1.bf16.msra.mxu0 0
    %275 = vmatprep.subr.bf16.mxu0 0
    %276 = vmatpush1.bf16.msra.mxu0 0
    %277 = vmatprep.subr.bf16.mxu0 0
    %278 = vmatpush1.bf16.msra.mxu0 0
    %279 = vmatprep.mubr.bf16.mxu0 0
    %280 = vmatmul.mubr.bf16.gmra.mrb[0].mxu0 %v175
    %v281 = vpop.f32.mrb[0].mxu0
    %v282 = vadd.f32 %v197, %v281
    %v283 = vpop.f32.mrb[0].mxu0
    %v284 = vpop.f32.mrb[0].mxu0
    %v285 = vpop.f32.mrb[0].mxu0
    %286 = vdwg.mxu0
    %287 = vst [vmem:[#allocation8] sm:$0xff] %v282
    // Predicated region
    $region34: #{tpu_custom_call.1} parent=1 // pred_check
      _
    $region35: #{tpu_custom_call.1} parent=1 // pred_check_branch
      %289 = sbr.rel (0) target = $region37
    $region36: #{tpu_custom_call.1} parent=1 // pred_region
      %s291 = ssub.s32 128, 128
      %292 = vsyncadd [#allocation4], %s291
      %s294 = sshll.u32 [#allocation8], 4
      %s295 = int_to_ptr.vmem [resolvable:$true] %s294
      %297 = dma.vmem_to_hbm [thread:$0]  %s295, 128, %s5, [#allocation4]
    $region37: #{tpu_custom_call.1} parent=1 // pred_fallthru
      _
    // Predicated region
    $region38: #{tpu_custom_call.1} parent=1 // pred_check
      _
    $region39: #{tpu_custom_call.1} parent=1 // pred_check_branch
      %299 = sbr.rel (0) target = $region41
    $region40: #{tpu_custom_call.1} parent=1 // pred_region
      %300 = dma.done [#allocation4], 128
    $region41: #{tpu_custom_call.1} parent=1 // pred_fallthru
      _
    %301 = vsyncpa [#allocation3], 1
    %302 = vsyncpa [#allocation6], 1
    %303 = vsyncpa [#allocation4], 1

</llo_original>
